<compile_context>
chip_gen: v5e
topology: v5e:2x2
jax: 0.10.0
libtpu: 0.0.40
codegen_flags: <defaults>
</compile_context>

<pallas_src>
import functools

import jax
import jax.numpy as jnp
from jax.experimental import pallas as pl
from jax.experimental.pallas import tpu as pltpu

_LANES = 128


def _sqcrelu_kernel(x_ref, o_ref, *, clip_min, clip_max):
    x = x_ref[...]
    x = jnp.clip(x, clip_min, clip_max)
    o_ref[...] = (x * x).astype(o_ref.dtype)


def _chip_generation():
    """Best-effort TPU generation detection ('v5e' / 'v6e' / 'v7x' / 'other')."""
    try:
        kind = jax.devices()[0].device_kind.lower()
    except Exception:
        return "other"
    if "v7" in kind:
        return "v7x"
    if "v6" in kind:
        return "v6e"
    if "v5" in kind:
        return "v5e"
    return "other"


def _tuning(gen):
    """Per-generation (block_bytes, vmem_limit_bytes)."""
    if gen == "v7x":
        # 8 MiB blocks; in+out double-buffered = 32 MiB == v7x scoped-VMEM
        # default, so raise the limit (still well under 64 MiB/TC physical).
        return 8 * 1024 * 1024, 48 * 1024 * 1024
    # v5e / v6e / unknown: 2 MiB is near roofline and fits every default limit.
    return 2 * 1024 * 1024, None


def sqcrelu(x, clip_min=0.0, clip_max=1.0, *, block_bytes=None):
    """Elementwise y = clip(x, clip_min, clip_max) ** 2 for any shape/float dtype."""
    orig_shape = x.shape
    dtype = x.dtype
    n = x.size
    if n == 0:
        return x
    clip_min = float(clip_min)
    clip_max = float(clip_max)

    # Misaligned total size: one fused XLA pass (1 read + 1 write of HBM,
    # identical traffic to the kernel path) instead of the old pad + slice
    # scheme that cost ~3x HBM traffic.
    if n % _LANES != 0:
        y = jnp.clip(x, clip_min, clip_max)
        return (y * y).astype(dtype)

    gen = _chip_generation()
    tuned_bytes, vmem_limit = _tuning(gen)
    if block_bytes is None:
        block_bytes = tuned_bytes

    itemsize = x.dtype.itemsize
    # dtype-aware sublane packing: 8 rows for 32-bit, 16 for bf16/f16, 32 for int8/fp8.
    sublane = max(8, 32 // itemsize)

    rows = n // _LANES                       # copy-free contiguous reshape
    x2d = x.reshape(rows, _LANES)

    # Block rows sized in bytes, as whole sublane groups of 128-lane rows.
    tile_rows = max(sublane, (block_bytes // (_LANES * itemsize)) // sublane * sublane)
    # tr == rows (block equals full array dims) is always layout-legal, and so
    # is any sublane-multiple tr with a masked partial last block.
    tr = min(tile_rows, rows)

    # v7x megacore: keep the number of grid steps even so both TensorCores get
    # the same number of blocks.  Gated to v7x (on v5e/v6e extra steps are
    # pure overhead).
    if gen == "v7x" and rows > sublane:
        steps = pl.cdiv(rows, tr)
        if steps % 2 == 1:
            tr_even = max(
                sublane, pl.cdiv(pl.cdiv(rows, steps + 1), sublane) * sublane
            )
            if pl.cdiv(rows, tr_even) % 2 == 0:
                tr = tr_even

    kernel = functools.partial(_sqcrelu_kernel, clip_min=clip_min, clip_max=clip_max)

    cp_kwargs = dict(dimension_semantics=("parallel",))
    if vmem_limit is not None:
        cp_kwargs["vmem_limit_bytes"] = vmem_limit

    out2d = pl.pallas_call(
        kernel,
        out_shape=jax.ShapeDtypeStruct((rows, _LANES), dtype),
        grid_spec=pltpu.PrefetchScalarGridSpec(
            num_scalar_prefetch=0,
            grid=(pl.cdiv(rows, tr),),
            in_specs=[pl.BlockSpec((tr, _LANES), lambda i: (i, 0))],
            out_specs=pl.BlockSpec((tr, _LANES), lambda i: (i, 0)),
        ),
        compiler_params=pltpu.CompilerParams(**cp_kwargs),
        cost_estimate=pl.CostEstimate(
            flops=3 * n, transcendentals=0, bytes_accessed=2 * n * itemsize
        ),
    )(x2d)

    return out2d.reshape(orig_shape)


def sqcrelu_ref(x, clip_min=0.0, clip_max=1.0):
    x = jnp.clip(x, clip_min, clip_max)
    return x * x


if __name__ == "__main__":
    key = jax.random.PRNGKey(0)

    # Small NCHW input consistent with a conv-style activation module.
    x = jax.random.normal(key, (2, 4, 16, 16), dtype=jnp.float32) * 2.0
    y = jax.block_until_ready(sqcrelu(x, clip_min=0.0, clip_max=1.0))
    y_ref = sqcrelu_ref(x, 0.0, 1.0)
    assert y.shape == x.shape and y.dtype == x.dtype
    assert jnp.allclose(y, y_ref, atol=1e-6, rtol=1e-6)

    # Misaligned total size exercises the single-pass fused fallback.
    x2 = jax.random.normal(jax.random.PRNGKey(1), (3, 5, 7, 11), dtype=jnp.float32)
    y2 = jax.block_until_ready(sqcrelu(x2, clip_min=0.0, clip_max=1.0))
    assert y2.shape == x2.shape
    assert jnp.allclose(y2, sqcrelu_ref(x2, 0.0, 1.0), atol=1e-6, rtol=1e-6)

    # bf16 exercises the dtype-aware sublane/tile sizing in the kernel path.
    xb = x.astype(jnp.bfloat16)
    yb = jax.block_until_ready(sqcrelu(xb, clip_min=0.0, clip_max=1.0))
    assert yb.dtype == jnp.bfloat16 and yb.shape == xb.shape
    assert jnp.allclose(
        yb.astype(jnp.float32),
        sqcrelu_ref(xb, 0.0, 1.0).astype(jnp.float32),
        atol=1e-2, rtol=1e-2,
    )

    print("KERNEL_OK")
</pallas_src>

<mosaic_0001>
module attributes {stable_mosaic.version = 11 : i64} {
  func.func @_sqcrelu_kernel(%arg0: i32, %arg1: memref<16x128xf32, #tpu.memory_space<vmem>>, %arg2: memref<16x128xf32, #tpu.memory_space<vmem>>) attributes {dimension_semantics = [#tpu.dimension_semantics<parallel>], iteration_bounds = array<i64: 1>, scalar_prefetch = 0 : i64, scratch_operands = 0 : i64, tpu.core_type = #tpu.core_type<tc>, window_params = [{transform_indices = @transform_0, window_bounds = array<i64: 16, 128>}, {transform_indices = @transform_1, window_bounds = array<i64: 16, 128>}]} {
    %c0 = arith.constant 0 : index
    %c0_0 = arith.constant 0 : index
    %0 = vector.load %arg1[%c0, %c0_0] : memref<16x128xf32, #tpu.memory_space<vmem>>, vector<16x128xf32>
    %cst = arith.constant 0.000000e+00 : f32
    %cst_1 = arith.constant 1.000000e+00 : f32
    %1 = vector.broadcast %cst : f32 to vector<16x128xf32>
    %2 = arith.maximumf %1, %0 : vector<16x128xf32>
    %3 = vector.broadcast %cst_1 : f32 to vector<16x128xf32>
    %4 = arith.minimumf %3, %2 : vector<16x128xf32>
    %5 = arith.mulf %4, %4 : vector<16x128xf32>
    %c0_2 = arith.constant 0 : index
    %c0_3 = arith.constant 0 : index
    %6 = vector.load %arg2[%c0_2, %c0_3] : memref<16x128xf32, #tpu.memory_space<vmem>>, vector<16x128xf32>
    tpu.vector_store %arg2[%c0_2, %c0_3], %5 {strides = array<i32>} : memref<16x128xf32, #tpu.memory_space<vmem>>, vector<16x128xf32>,
    return
  }
  func.func @transform_0(%arg0: i32) -> (i32, i32) {
    %c0_i32 = arith.constant 0 : i32
    %c0_i32_0 = arith.constant 0 : i32
    return %arg0, %c0_i32 : i32, i32
  }
  func.func @transform_1(%arg0: i32) -> (i32, i32) {
    %c0_i32 = arith.constant 0 : i32
    %c0_i32_0 = arith.constant 0 : i32
    return %arg0, %c0_i32 : i32, i32
  }
}

</mosaic_0001>

<llo_original>
// kernel: tpu_custom_call.1
$region0: #{tpu_custom_call.1}
  #allocation0 [shape = 'u32[]', space=smem, size = 0x4, offset = 0x4, fixed_abs, tag = 'smem constant byte address 0x4 - core index']
  #allocation1 [shape = 'u32[72,128]{1,0:T(1,128)}', space=vmem, size = 0x9000, scoped, tag = 'internal scratch']
  %s0 = inlined_call_operand.hbm [shape: f32[16,128], index: 0, kind: input, shape index: {}]
  %s1 = inlined_call_operand.hbm [shape: f32[16,128], index: 1, kind: output, shape index: {}]
  %s2 = sld [smem:[#allocation0]]
  $region18: #{tpu_custom_call.1} parent=0
    _
  %s4 = ssub.s32 1, %s2
  %s5 = scalar_select 0, %s4, %s2
  $region1: #{tpu_custom_call.1} parent=0
    #allocation2 [shape = 'u8[8192]{0}', space=vmem, size = 0x2000, scoped, tag = 'input window, operand 0, single buffered']
    #allocation3 [shape = 's32[1]{0}', space=sflag, size = 0x4, scoped, tag = 'scoped memory for tpu_custom_call.1']
    #allocation4 [shape = 's32[1]{0}', space=sflag, size = 0x4, scoped, tag = 'scoped memory for tpu_custom_call.1']
    #allocation5 [shape = 'u8[8192]{0}', space=vmem, size = 0x2000, scoped, tag = 'output window, operand 0, single buffered']
    %6 = vsyncpa [#allocation3], 0
    %7 = vsyncpa [#allocation4], 0
    // Predicated region
    $region2: #{tpu_custom_call.1} parent=1 // pred_check
      _
    $region3: #{tpu_custom_call.1} parent=1 // pred_check_branch
      %9 = sbr.rel (0) target = $region5
    $region4: #{tpu_custom_call.1} parent=1 // pred_region
      %11 = vsyncadd [#allocation3], 0
      %s12 = sshll.u32 %s0, 4
      %s13 = int_to_ptr.hbm [resolvable:$true] %s12
      %s14 = sshll.u32 [#allocation2], 4
      %s15 = int_to_ptr.vmem [resolvable:$true] %s14
      %20 = dma.hbm_to_vmem [thread:$0]  %s13, 256, %s15, [#allocation3], 128, 128, 8
    $region5: #{tpu_custom_call.1} parent=1 // pred_fallthru
      _
    // Predicated region
    $region6: #{tpu_custom_call.1} parent=1 // pred_check
      _
    $region7: #{tpu_custom_call.1} parent=1 // pred_check_branch
      %22 = sbr.rel (0) target = $region9
    $region8: #{tpu_custom_call.1} parent=1 // pred_region
      %24 = dma.done [#allocation3], 256
    $region9: #{tpu_custom_call.1} parent=1 // pred_fallthru
      _
    %v25 = vld [vmem:[#allocation2] sm:$0xff]
    %v26 = vld [vmem:[#allocation2 + $0x8] sm:$0xff]
    %v27 = vmax.f32 %v25, 0.0
    %v28 = vmax.f32 %v26, 0.0
    %v29 = vmin.f32 %v27, 1.0
    %v30 = vmin.f32 %v28, 1.0
    %v31 = vmul.f32 %v29, %v29
    %v32 = vmul.f32 %v30, %v30
    %33 = vst [vmem:[#allocation5] sm:$0xff] %v31
    %34 = vst [vmem:[#allocation5 + $0x8] sm:$0xff] %v32
    // Predicated region
    $region10: #{tpu_custom_call.1} parent=1 // pred_check
      _
    $region11: #{tpu_custom_call.1} parent=1 // pred_check_branch
      %36 = sbr.rel (0) target = $region13
    $region12: #{tpu_custom_call.1} parent=1 // pred_region
      %38 = vsyncadd [#allocation4], 0
      %s39 = sshll.u32 [#allocation5], 4
      %s40 = int_to_ptr.vmem [resolvable:$true] %s39
      %s41 = sshll.u32 %s1, 4
      %s42 = int_to_ptr.hbm [resolvable:$true] %s41
      %47 = dma.vmem_to_hbm [thread:$0]  %s40, 256, %s42, [#allocation4], 128, 128, 8
    $region13: #{tpu_custom_call.1} parent=1 // pred_fallthru
      _
    // Predicated region
    $region14: #{tpu_custom_call.1} parent=1 // pred_check
      _
    $region15: #{tpu_custom_call.1} parent=1 // pred_check_branch
      %49 = sbr.rel (0) target = $region17
    $region16: #{tpu_custom_call.1} parent=1 // pred_region
      %51 = dma.done [#allocation4], 256
    $region17: #{tpu_custom_call.1} parent=1 // pred_fallthru
      _
    %52 = vsyncpa [#allocation3], 1
    %53 = vsyncpa [#allocation4], 1

</llo_original>
